<compile_context>
chip_gen: v6e
topology: v6e:2x2x1
jax: 0.10.0
libtpu: 0.0.40
codegen_flags: <defaults>
</compile_context>

<pallas_src>
import jax
import jax.numpy as jnp
from jax.experimental import pallas as pl
from jax.experimental.pallas import tpu as pltpu


def _agg_loss_kernel(h_ref, ext_ref, abs_ref, out_ref):
    # h_ref: (1, 1) scalar parameter in SMEM.
    # ext_ref / abs_ref / out_ref: (tile_r, C) VMEM tiles (native dtype).
    h = h_ref[0, 0]
    one_minus_h = 1.0 - h
    e = ext_ref[...].astype(jnp.float32)   # upcast in vregs (v5e VPU has no bf16)
    a = abs_ref[...].astype(jnp.float32)
    out_ref[...] = (h * e + one_minus_h * a).astype(out_ref.dtype)


_LANE_WIDTHS = (4096, 2048, 1024, 512, 256, 128)   # lane-dense candidate widths
_TARGET_TILE_BYTES = 2 * 1024 * 1024               # ~2 MiB per operand tile


def _aggregation_loss_impl(hparam, ext_loss, abs_loss):
    assert ext_loss.shape == abs_loss.shape
    orig_shape = ext_loss.shape
    out_dtype = jnp.result_type(ext_loss.dtype, abs_loss.dtype)

    n = int(ext_loss.size)
    itemsize = jnp.dtype(out_dtype).itemsize

    ext_flat = ext_loss.reshape(-1).astype(out_dtype)
    abs_flat = abs_loss.reshape(-1).astype(out_dtype)
    h = jnp.asarray(hparam, jnp.float32).reshape(1, 1)

    # Pick a lane-dense 2-D view (rows, C) with C a multiple of 128 when possible.
    c = next((w for w in _LANE_WIDTHS if n % w == 0), None)
    pad = 0
    if c is None:
        if n * itemsize <= _TARGET_TILE_BYTES:
            # Small / oddly sized: single full-array block, no padding at all.
            c = n
        else:
            # Rare: large but not a multiple of 128 — minimal (<128 elem) pad.
            pad = (-n) % 128
            ext_flat = jnp.pad(ext_flat, (0, pad))
            abs_flat = jnp.pad(abs_flat, (0, pad))
            c = next(w for w in _LANE_WIDTHS if (n + pad) % w == 0)
    n_p = n + pad
    r = n_p // c

    # Rows per tile: ~2 MiB per operand, multiple of 8 unless it is the full dim.
    rows_per_tile = max(1, _TARGET_TILE_BYTES // (c * itemsize))
    if rows_per_tile < r:
        tile_r = max(8, (rows_per_tile // 8) * 8)
    else:
        tile_r = r
    grid = (pl.cdiv(r, tile_r),)

    ext2 = ext_flat.reshape(r, c)
    abs2 = abs_flat.reshape(r, c)

    out2 = pl.pallas_call(
        _agg_loss_kernel,
        out_shape=jax.ShapeDtypeStruct((r, c), out_dtype),
        grid_spec=pltpu.PrefetchScalarGridSpec(
            num_scalar_prefetch=0,
            grid=grid,
            in_specs=[
                pl.BlockSpec(memory_space=pltpu.SMEM),         # hparam scalar
                pl.BlockSpec((tile_r, c), lambda i: (i, 0)),   # ext_loss row tile
                pl.BlockSpec((tile_r, c), lambda i: (i, 0)),   # abs_loss row tile
            ],
            out_specs=pl.BlockSpec((tile_r, c), lambda i: (i, 0)),
        ),
        compiler_params=pltpu.CompilerParams(
            dimension_semantics=("parallel",),     # shards across v7x's 2 TCs
            vmem_limit_bytes=32 * 1024 * 1024,
        ),
    )(h, ext2, abs2)

    out_flat = out2.reshape(-1)
    if pad:
        out_flat = out_flat[:n]
    return out_flat.reshape(orig_shape)


aggregation_loss = jax.jit(_aggregation_loss_impl)


if __name__ == "__main__":
    key = jax.random.PRNGKey(0)

    # Parameter init matching nn.Parameter(torch.tensor(0.5)).
    hparam = jnp.float32(0.5)

    ok = True
    # Shapes: tiny per-sample losses (single full block path) and a larger
    # loss map that exercises the row-tiled, pipelined path.
    for shape in [(2, 16), (2, 4, 16, 16), (1400, 1024)]:
        k1, k2, key = jax.random.split(key, 3)
        ext_loss = jax.random.normal(k1, shape, dtype=jnp.float32)
        abs_loss = jax.random.normal(k2, shape, dtype=jnp.float32)

        out = aggregation_loss(hparam, ext_loss, abs_loss)
        jax.block_until_ready(out)

        ref = hparam * ext_loss + (1.0 - hparam) * abs_loss
        ok = ok and (out.shape == ext_loss.shape)
        ok = ok and bool(jnp.allclose(out, ref, atol=1e-6, rtol=1e-6))

    assert ok
    print("KERNEL_OK")
</pallas_src>

<mosaic_0001>
module attributes {stable_mosaic.version = 11 : i64} {
  func.func @_agg_loss_kernel(%arg0: i32, %arg1: memref<1x1xf32, #tpu.memory_space<smem>>, %arg2: memref<1x32xf32, #tpu.memory_space<vmem>>, %arg3: memref<1x32xf32, #tpu.memory_space<vmem>>, %arg4: memref<1x32xf32, #tpu.memory_space<vmem>>) attributes {dimension_semantics = [#tpu.dimension_semantics<parallel>], iteration_bounds = array<i64: 1>, scalar_prefetch = 0 : i64, scratch_operands = 0 : i64, tpu.core_type = #tpu.core_type<tc>, window_params = [{transform_indices = @transform_0, window_bounds = array<i64: 1, 1>}, {transform_indices = @transform_1, window_bounds = array<i64: 1, 32>}, {transform_indices = @transform_2, window_bounds = array<i64: 1, 32>}, {transform_indices = @transform_3, window_bounds = array<i64: 1, 32>}]} {
    %c0 = arith.constant 0 : index
    %c0_0 = arith.constant 0 : index
    %0 = memref.load %arg1[%c0, %c0_0] : memref<1x1xf32, #tpu.memory_space<smem>>
    %cst = arith.constant 1.000000e+00 : f32
    %1 = arith.subf %cst, %0 : f32
    %c0_1 = arith.constant 0 : index
    %c0_2 = arith.constant 0 : index
    %2 = vector.load %arg2[%c0_1, %c0_2] : memref<1x32xf32, #tpu.memory_space<vmem>>, vector<1x32xf32>
    %c0_3 = arith.constant 0 : index
    %c0_4 = arith.constant 0 : index
    %3 = vector.load %arg3[%c0_3, %c0_4] : memref<1x32xf32, #tpu.memory_space<vmem>>, vector<1x32xf32>
    %4 = vector.broadcast %0 : f32 to vector<1x32xf32>
    %5 = arith.mulf %4, %2 : vector<1x32xf32>
    %6 = vector.broadcast %1 : f32 to vector<1x32xf32>
    %7 = arith.mulf %6, %3 : vector<1x32xf32>
    %8 = arith.addf %5, %7 : vector<1x32xf32>
    %c0_5 = arith.constant 0 : index
    %c0_6 = arith.constant 0 : index
    %9 = vector.load %arg4[%c0_5, %c0_6] : memref<1x32xf32, #tpu.memory_space<vmem>>, vector<1x32xf32>
    tpu.vector_store %arg4[%c0_5, %c0_6], %8 {strides = array<i32>} : memref<1x32xf32, #tpu.memory_space<vmem>>, vector<1x32xf32>,
    return
  }
  func.func @transform_0(%arg0: i32) -> (i32, i32) {
    %c0_i32 = arith.constant 0 : i32
    %c0_i32_0 = arith.constant 0 : i32
    %c0_i32_1 = arith.constant 0 : i32
    return %c0_i32, %c0_i32_0 : i32, i32
  }
  func.func @transform_1(%arg0: i32) -> (i32, i32) {
    %c0_i32 = arith.constant 0 : i32
    %c0_i32_0 = arith.constant 0 : i32
    return %arg0, %c0_i32 : i32, i32
  }
  func.func @transform_2(%arg0: i32) -> (i32, i32) {
    %c0_i32 = arith.constant 0 : i32
    %c0_i32_0 = arith.constant 0 : i32
    return %arg0, %c0_i32 : i32, i32
  }
  func.func @transform_3(%arg0: i32) -> (i32, i32) {
    %c0_i32 = arith.constant 0 : i32
    %c0_i32_0 = arith.constant 0 : i32
    return %arg0, %c0_i32 : i32, i32
  }
}

</mosaic_0001>

<llo_original>
// kernel: _aggregation_loss_impl.1
$region0: #{_aggregation_loss_impl.1}
  #allocation0 [shape = 'u32[]', space=smem, size = 0x4, offset = 0x4, fixed_abs, tag = 'smem constant byte address 0x4 - core index']
  #allocation1 [shape = 'u32[144,128]{1,0:T(1,128)}', space=vmem, size = 0x12000, scoped, tag = 'internal scratch']
  #allocation2 [shape = 'f32[1,1]{1,0:T(1,128)S(6)}', space=smem, size = 0x200, scoped, tag = 'scoped memory for _aggregation_loss_impl.1']
  %s0 = inlined_call_operand.<no memory space> [shape: f32[1,1], index: 0, kind: input, shape index: {}]
  %s1 = inlined_call_operand.vmem [shape: f32[1,32], index: 1, kind: input, shape index: {}]
  %s2 = inlined_call_operand.vmem [shape: f32[1,32], index: 2, kind: input, shape index: {}]
  %s3 = inlined_call_operand.vmem [shape: f32[1,32], index: 3, kind: output, shape index: {}]
  %s4 = sld [smem:[#allocation0]]
  $region22: #{_aggregation_loss_impl.1} parent=0
    _
  %s6 = ssub.s32 1, %s4
  %s7 = scalar_select 0, %s6, %s4
  %8 = sst [smem:[#allocation2]] %s0
  // Predicated region
  $region2: #{_aggregation_loss_impl.1} parent=0 // pred_check
    _
  $region3: #{_aggregation_loss_impl.1} parent=0 // pred_check_branch
    %10 = sbr.rel (0) target = $region5
  $region4: #{_aggregation_loss_impl.1} parent=0 // pred_region
    _
  $region5: #{_aggregation_loss_impl.1} parent=0 // pred_fallthru
    _
  // Predicated region
  $region6: #{_aggregation_loss_impl.1} parent=0 // pred_check
    _
  $region7: #{_aggregation_loss_impl.1} parent=0 // pred_check_branch
    %12 = sbr.rel (0) target = $region9
  $region8: #{_aggregation_loss_impl.1} parent=0 // pred_region
    _
  $region9: #{_aggregation_loss_impl.1} parent=0 // pred_fallthru
    _
  // Predicated region
  $region10: #{_aggregation_loss_impl.1} parent=0 // pred_check
    _
  $region11: #{_aggregation_loss_impl.1} parent=0 // pred_check_branch
    %14 = sbr.rel (0) target = $region13
  $region12: #{_aggregation_loss_impl.1} parent=0 // pred_region
    _
  $region13: #{_aggregation_loss_impl.1} parent=0 // pred_fallthru
    _
  %s15 = sld [smem:[#allocation2]]
  %s16 = ssub.f32 1.0, %s15
  %v17 = vld [vmem:[%s1] sm:$0x1]
  %v18 = vld [vmem:[%s2] sm:$0x1]
  %v19 = vstv %s15
  %v20 = vmul.f32 %v19, %v17
  %v21 = vstv %s16
  %v22 = vmul.f32 %v21, %v18
  %v23 = vadd.f32 %v20, %v22
  %vm24 = vcmask 253952
  %25 = vst.msk [vmem:[%s3] sm:$0x1] %vm24, %v23
  // Predicated region
  $region14: #{_aggregation_loss_impl.1} parent=0 // pred_check
    _
  $region15: #{_aggregation_loss_impl.1} parent=0 // pred_check_branch
    %27 = sbr.rel (0) target = $region17
  $region16: #{_aggregation_loss_impl.1} parent=0 // pred_region
    _
  $region17: #{_aggregation_loss_impl.1} parent=0 // pred_fallthru
    _
  // Predicated region
  $region18: #{_aggregation_loss_impl.1} parent=0 // pred_check
    _
  $region19: #{_aggregation_loss_impl.1} parent=0 // pred_check_branch
    %29 = sbr.rel (0) target = $region21
  $region20: #{_aggregation_loss_impl.1} parent=0 // pred_region
    _
  $region21: #{_aggregation_loss_impl.1} parent=0 // pred_fallthru
    _

</llo_original>
